<compile_context>
chip_gen: v5e
topology: v5e:2x2
jax: 0.10.0
libtpu: 0.0.40
codegen_flags: <defaults>
</compile_context>

<pallas_src>
import math

import jax
import jax.numpy as jnp
from jax.experimental import pallas as pl
from jax.experimental.pallas import tpu as pltpu


def _round_up(x: int, m: int) -> int:
    return ((x + m - 1) // m) * m


def _pick_tile(n: int, unit: int, limit: int) -> int:
    """Largest multiple of `unit` that divides `n` and is <= limit (>= unit)."""
    best = unit
    d = unit
    top = min(n, max(limit, unit))
    while d <= top:
        if n % d == 0:
            best = d
        d += unit
    return best


def _vmem_budget_bytes() -> int:
    """Generation-aware VMEM budget (~75% of physical capacity)."""
    try:
        cap = int(pltpu.get_tpu_info().vmem_capacity_bytes)
    except Exception:
        cap = 64 * 1024 * 1024  # conservative (v7x-sized) fallback
    return (cap * 3) // 4


# --------------------------------------------------------------------------
# Kernel 1: projection  H = X @ W   (computed exactly once per node)
# --------------------------------------------------------------------------
def _proj_kernel(x_ref, w_ref, h_ref):
    # x_ref: [TP, C_in] f32, w_ref: [C_in, C_out_p] f32, h_ref: [TP, C_out_p] bf16
    h_ref[...] = jnp.dot(
        x_ref[...], w_ref[...], preferred_element_type=jnp.float32
    ).astype(h_ref.dtype)


# --------------------------------------------------------------------------
# Kernel 2: aggregation  out = (adj @ H) / deg + b
# --------------------------------------------------------------------------
def _agg_kernel(adj_ref, h_ref, b_ref, o_ref, acc_ref, deg_ref):
    """One (batch b, row-tile i, k-tile k) grid step.

    adj_ref: [TM, TK]       int8  adjacency tile (rows = i-tile, cols = k-tile)
    h_ref:   [TK, C_out_p]  bf16  projected features of the k-tile of nodes
    b_ref:   [1, C_out_p]   f32   bias (resident)
    o_ref:   [TM, C_out_p]        output row tile
    acc_ref: [TM, C_out_p]  f32   VMEM aggregation accumulator
    deg_ref: [TM, 1]        f32   VMEM degree accumulator
    """
    k = pl.program_id(2)

    @pl.when(k == 0)
    def _init():
        acc_ref[...] = jnp.zeros_like(acc_ref)
        deg_ref[...] = jnp.zeros_like(deg_ref)

    # int8 in HBM/VMEM, bf16 only for the MXU (cast hides under the DMA stall).
    adj = adj_ref[...].astype(jnp.bfloat16)

    acc_ref[...] += jnp.dot(adj, h_ref[...], preferred_element_type=jnp.float32)

    # Degree: f32-accumulated row reduce of the bf16 view (no f32 tile copy).
    deg_ref[...] += jnp.sum(adj, axis=-1, dtype=jnp.float32, keepdims=True)

    @pl.when(k == pl.num_programs(2) - 1)
    def _finalize():
        inv_deg = pl.reciprocal(deg_ref[...], approx=True)  # EUP slot, ~free
        o_ref[...] = (acc_ref[...] * inv_deg + b_ref[...]).astype(o_ref.dtype)


# --------------------------------------------------------------------------
# Wrapper
# --------------------------------------------------------------------------
def gcn_layer(node_feats, adj_matrix, weight, bias, *,
              tm_max=256, tk_max=None, out_dtype=None):
    """node_feats: [B, N, C_in]; adj_matrix: [B, N, N] (0/1, self-loops added);
    weight: [C_in, C_out] (pre-transposed nn.Linear weight); bias: [C_out].
    Returns [B, N, C_out]."""
    B, N, C_in = node_feats.shape
    C_out = weight.shape[1]
    out_dtype = node_feats.dtype if out_dtype is None else out_dtype
    out_itemsize = jnp.dtype(out_dtype).itemsize

    # Padded, lane-dense extents.
    n_pad = _round_up(N, 128)
    c_out_pad = _round_up(C_out, 128)
    if 128 < c_out_pad <= 256:
        c_out_pad = 256  # fill the 256-wide MXU result on v6e/v7x

    vmem_budget = _vmem_budget_bytes()

    # ---- tile selection for the aggregation pass (generation-aware) --------
    tm = _pick_tile(n_pad, 128, tm_max)

    def agg_ws(tm_, tk_):
        return (2 * tm_ * tk_ * 1                      # adj int8 (double buffered)
                + 2 * tk_ * c_out_pad * 2              # H bf16
                + 2 * 128 * 4                          # bias tile
                + 2 * tm_ * c_out_pad * out_itemsize   # output tile
                + tm_ * c_out_pad * 4                  # f32 accumulator
                + tm_ * 128 * 4)                       # degree accumulator

    tk_cap = n_pad if tk_max is None else min(n_pad, max(128, tk_max))
    tk = _pick_tile(n_pad, 128, tk_cap)                # whole rows if they fit
    while tk > 128 and agg_ws(tm, tk) > vmem_budget:
        tk = _pick_tile(n_pad, 128, tk - 128)
    while tm > 128 and agg_ws(tm, tk) > vmem_budget:
        tm = _pick_tile(n_pad, 128, tm - 128)

    # ---- pad / cast operands ------------------------------------------------
    x_p = jnp.pad(node_feats, ((0, 0), (0, n_pad - N), (0, 0))).astype(jnp.float32)
    # 0/1 adjacency is exact in int8: halves (or better) the dominant HBM stream.
    adj_p = jnp.pad(adj_matrix,
                    ((0, 0), (0, n_pad - N), (0, n_pad - N))).astype(jnp.int8)
    w_p = jnp.pad(weight, ((0, 0), (0, c_out_pad - C_out))).astype(jnp.float32)
    b_p = jnp.pad(bias, (0, c_out_pad - C_out)).reshape(1, c_out_pad).astype(jnp.float32)

    # ---- pass 1: H = X @ W  (once per node, bf16 result) --------------------
    tp = _pick_tile(n_pad, 128, 512)
    h = pl.pallas_call(
        _proj_kernel,
        out_shape=jax.ShapeDtypeStruct((B, n_pad, c_out_pad), jnp.bfloat16),
        grid_spec=pltpu.PrefetchScalarGridSpec(
            num_scalar_prefetch=0,
            grid=(B, n_pad // tp),
            in_specs=[
                pl.BlockSpec((pl.Squeezed(), tp, C_in), lambda b, i: (b, i, 0)),
                pl.BlockSpec((C_in, c_out_pad), lambda b, i: (0, 0)),
            ],
            out_specs=pl.BlockSpec((pl.Squeezed(), tp, c_out_pad),
                                   lambda b, i: (b, i, 0)),
        ),
        compiler_params=pltpu.CompilerParams(
            dimension_semantics=("parallel", "parallel"),
            vmem_limit_bytes=int(vmem_budget),
        ),
        cost_estimate=pl.CostEstimate(
            flops=int(2 * B * n_pad * C_in * c_out_pad),
            transcendentals=0,
            bytes_accessed=int(x_p.size * 4 + w_p.size * 4
                               + B * n_pad * c_out_pad * 2),
        ),
    )(x_p, w_p)

    # ---- pass 2: out = (adj @ H) / deg + b ----------------------------------
    grid = (B, n_pad // tm, n_pad // tk)
    n_i, n_k = grid[1], grid[2]
    h_refetch = 1 if n_k == 1 else n_i  # H re-streamed per row-tile only when k is tiled

    out_padded = pl.pallas_call(
        _agg_kernel,
        out_shape=jax.ShapeDtypeStruct((B, n_pad, c_out_pad), out_dtype),
        grid_spec=pltpu.PrefetchScalarGridSpec(
            num_scalar_prefetch=0,
            grid=grid,
            in_specs=[
                # adjacency tile: rows = i-tile, cols = k-tile (int8 stream)
                pl.BlockSpec((pl.Squeezed(), tm, tk), lambda b, i, k: (b, i, k)),
                # projected features for the k-tile of source nodes
                pl.BlockSpec((pl.Squeezed(), tk, c_out_pad), lambda b, i, k: (b, k, 0)),
                # bias: constant index_map -> resident, no re-DMA
                pl.BlockSpec((1, c_out_pad), lambda b, i, k: (0, 0)),
            ],
            out_specs=pl.BlockSpec((pl.Squeezed(), tm, c_out_pad),
                                   lambda b, i, k: (b, i, 0)),
            scratch_shapes=[
                pltpu.VMEM((tm, c_out_pad), jnp.float32),  # aggregation acc
                pltpu.VMEM((tm, 1), jnp.float32),          # degree acc
            ],
        ),
        compiler_params=pltpu.CompilerParams(
            dimension_semantics=("parallel", "parallel", "arbitrary"),
            vmem_limit_bytes=int(vmem_budget),
        ),
        cost_estimate=pl.CostEstimate(
            flops=int(2 * B * n_pad * n_pad * c_out_pad),
            transcendentals=int(B * n_pad),
            bytes_accessed=int(adj_p.size
                               + B * h_refetch * n_pad * c_out_pad * 2
                               + B * n_pad * c_out_pad * out_itemsize),
        ),
    )(adj_p, h, b_p)

    if n_pad == N and c_out_pad == C_out:
        return out_padded
    return out_padded[:, :N, :C_out]


# --------------------------------------------------------------------------
# References
# --------------------------------------------------------------------------
def _reference_f32(x, adj, w, b):
    """Exact module semantics in f32."""
    h = x @ w + b
    return (adj @ h) / jnp.sum(adj, axis=-1, keepdims=True)


def _reference_mixed(x, adj, w, b):
    """Mirrors the kernel's precision path (f32 projection rounded to bf16,
    bf16 aggregation with f32 accumulation, bias after normalization)."""
    h = jnp.einsum("bnc,cd->bnd", x, w,
                   preferred_element_type=jnp.float32).astype(jnp.bfloat16)
    agg = jnp.einsum("bnm,bmd->bnd", adj.astype(jnp.bfloat16), h,
                     preferred_element_type=jnp.float32)
    deg = jnp.sum(adj, axis=-1, keepdims=True)
    return agg / deg + b


if __name__ == "__main__":
    # ---- Test 1: tutorial shapes (batch=1, nodes=4, c_in=2, c_out=2) --------
    B, N, C_in, C_out = 1, 4, 2, 2
    node_feats = jnp.arange(B * N * C_in, dtype=jnp.float32).reshape(B, N, C_in)
    adj_matrix = jnp.array(
        [[[1, 1, 0, 0],
          [1, 1, 1, 1],
          [0, 1, 1, 1],
          [0, 1, 1, 1]]], dtype=jnp.float32)

    key = jax.random.PRNGKey(0)
    kw, kb = jax.random.split(key)
    bound = 1.0 / math.sqrt(C_in)
    w_t = jax.random.uniform(kw, (C_out, C_in), jnp.float32, -bound, bound)
    bias = jax.random.uniform(kb, (C_out,), jnp.float32, -bound, bound)
    weight = w_t.T  # [C_in, C_out] for x @ W

    out = gcn_layer(node_feats, adj_matrix, weight, bias)
    jax.block_until_ready(out)
    assert out.shape == (B, N, C_out)
    assert jnp.allclose(out, _reference_mixed(node_feats, adj_matrix, weight, bias),
                        rtol=1e-2, atol=1e-2)
    assert jnp.allclose(out, _reference_f32(node_feats, adj_matrix, weight, bias),
                        rtol=5e-2, atol=1e-1)

    # ---- Test 2: larger shapes, whole-row tk (k axis collapsed) -------------
    B2, N2, C_in2, C_out2 = 2, 384, 32, 64
    k1, k2, k3, k4 = jax.random.split(jax.random.PRNGKey(0), 4)
    x2 = jax.random.normal(k1, (B2, N2, C_in2), jnp.float32)
    adj2 = (jax.random.uniform(k2, (B2, N2, N2)) < 0.1).astype(jnp.float32)
    adj2 = jnp.maximum(adj2, jnp.eye(N2, dtype=jnp.float32)[None])  # self-loops
    bound2 = 1.0 / math.sqrt(C_in2)
    w2 = jax.random.uniform(k3, (C_out2, C_in2), jnp.float32, -bound2, bound2).T
    b2 = jax.random.uniform(k4, (C_out2,), jnp.float32, -bound2, bound2)

    out2 = gcn_layer(x2, adj2, w2, b2)
    jax.block_until_ready(out2)
    assert out2.shape == (B2, N2, C_out2)
    assert jnp.allclose(out2, _reference_mixed(x2, adj2, w2, b2),
                        rtol=1e-2, atol=1e-2)
    assert jnp.allclose(out2, _reference_f32(x2, adj2, w2, b2),
                        rtol=5e-2, atol=1e-1)

    # ---- Test 3: force k-tiling to exercise the accumulator path ------------
    out3 = gcn_layer(x2, adj2, w2, b2, tm_max=128, tk_max=128)
    jax.block_until_ready(out3)
    assert jnp.allclose(out3, out2, rtol=1e-2, atol=1e-2)

    print("KERNEL_OK")
</pallas_src>

<mosaic_0001>
module attributes {stable_mosaic.version = 11 : i64} {
  func.func @_proj_kernel(%arg0: i32, %arg1: i32, %arg2: memref<1x128x2xf32, #tpu.memory_space<vmem>>, %arg3: memref<2x128xf32, #tpu.memory_space<vmem>>, %arg4: memref<1x128x128xbf16, #tpu.memory_space<vmem>>) attributes {dimension_semantics = [#tpu.dimension_semantics<parallel>, #tpu.dimension_semantics<parallel>], iteration_bounds = array<i64: 1, 1>, scalar_prefetch = 0 : i64, scratch_operands = 0 : i64, tpu.core_type = #tpu.core_type<tc>, window_params = [{transform_indices = @transform_0, window_bounds = array<i64: 1, 128, 2>}, {pipeline_mode = #tpu.pipeline_mode<synchronous>, transform_indices = @transform_1, window_bounds = array<i64: 2, 128>}, {transform_indices = @transform_2, window_bounds = array<i64: 1, 128, 128>}]} {
    %c0 = arith.constant 0 : index
    %c0_0 = arith.constant 0 : index
    %c0_1 = arith.constant 0 : index
    %0 = vector.load %arg2[%c0, %c0_0, %c0_1] : memref<1x128x2xf32, #tpu.memory_space<vmem>>, vector<1x128x2xf32>
    %1 = vector.shape_cast %0 : vector<1x128x2xf32> to vector<128x2xf32>
    %c0_2 = arith.constant 0 : index
    %c0_3 = arith.constant 0 : index
    %2 = vector.load %arg3[%c0_2, %c0_3] : memref<2x128xf32, #tpu.memory_space<vmem>>, vector<2x128xf32>
    %cst = arith.constant dense<0.000000e+00> : vector<128x128xf32>
    %3 = tpu.matmul %1, %2, %cst {dimension_numbers = #tpu.dot_dimension_numbers<[1], [0], [0], [1], [0, 0, 1, 1], [], []>} : vector<128x2xf32>, vector<2x128xf32>, vector<128x128xf32> -> vector<128x128xf32>
    %4 = arith.truncf %3 : vector<128x128xf32> to vector<128x128xbf16>
    %c0_4 = arith.constant 0 : index
    %c0_5 = arith.constant 0 : index
    %c0_6 = arith.constant 0 : index
    %5 = vector.load %arg4[%c0_4, %c0_5, %c0_6] : memref<1x128x128xbf16, #tpu.memory_space<vmem>>, vector<1x128x128xbf16>
    %6 = vector.shape_cast %5 : vector<1x128x128xbf16> to vector<128x128xbf16>
    %7 = vector.shape_cast %4 : vector<128x128xbf16> to vector<1x128x128xbf16>
    tpu.vector_store %arg4[%c0_4, %c0_5, %c0_6], %7 {strides = array<i32>} : memref<1x128x128xbf16, #tpu.memory_space<vmem>>, vector<1x128x128xbf16>,
    return
  }
  func.func @transform_0(%arg0: i32, %arg1: i32) -> (i32, i32, i32) {
    %c0_i32 = arith.constant 0 : i32
    %c0_i32_0 = arith.constant 0 : i32
    return %arg0, %arg1, %c0_i32 : i32, i32, i32
  }
  func.func @transform_1(%arg0: i32, %arg1: i32) -> (i32, i32) {
    %c0_i32 = arith.constant 0 : i32
    %c0_i32_0 = arith.constant 0 : i32
    %c0_i32_1 = arith.constant 0 : i32
    return %c0_i32, %c0_i32_0 : i32, i32
  }
  func.func @transform_2(%arg0: i32, %arg1: i32) -> (i32, i32, i32) {
    %c0_i32 = arith.constant 0 : i32
    %c0_i32_0 = arith.constant 0 : i32
    return %arg0, %arg1, %c0_i32 : i32, i32, i32
  }
}

</mosaic_0001>

<llo_original>
// kernel: tpu_custom_call.1
$region0: #{tpu_custom_call.1}
  #allocation0 [shape = 'u32[]', space=smem, size = 0x4, offset = 0x4, fixed_abs, tag = 'smem constant byte address 0x4 - core index']
  #allocation1 [shape = 'u32[72,128]{1,0:T(1,128)}', space=vmem, size = 0x9000, scoped, tag = 'internal scratch']
  %s0 = inlined_call_operand.vmem [shape: f32[1,128,2], index: 0, kind: input, shape index: {}]
  %s1 = inlined_call_operand.vmem [shape: f32[2,128], index: 1, kind: input, shape index: {}]
  %s2 = inlined_call_operand.hbm [shape: bf16[1,128,128], index: 2, kind: output, shape index: {}]
  %s3 = sld [smem:[#allocation0]]
  $region18: #{tpu_custom_call.1} parent=0
    _
  %s5 = ssub.s32 1, %s3
  %s6 = scalar_select 0, %s5, %s3
  $region1: #{tpu_custom_call.1} parent=0
    #allocation2 [shape = 'u8[32768]{0}', space=vmem, size = 0x8000, scoped, tag = 'output window, operand 0, single buffered']
    #allocation3 [shape = 's32[1]{0}', space=sflag, size = 0x4, scoped, tag = 'scoped memory for tpu_custom_call.1']
    %7 = vsyncpa [#allocation3], 0
    // Predicated region
    $region2: #{tpu_custom_call.1} parent=1 // pred_check
      _
    $region3: #{tpu_custom_call.1} parent=1 // pred_check_branch
      %9 = sbr.rel (0) target = $region5
    $region4: #{tpu_custom_call.1} parent=1 // pred_region
      _
    $region5: #{tpu_custom_call.1} parent=1 // pred_fallthru
      _
    // Predicated region
    $region6: #{tpu_custom_call.1} parent=1 // pred_check
      _
    $region7: #{tpu_custom_call.1} parent=1 // pred_check_branch
      %11 = sbr.rel (0) target = $region9
    $region8: #{tpu_custom_call.1} parent=1 // pred_region
      _
    $region9: #{tpu_custom_call.1} parent=1 // pred_fallthru
      _
    %v12 = vld [vmem:[%s0] sm:$0xff]
    %v13 = vld [vmem:[%s0 + $0x8] sm:$0xff]
    %v14 = vld [vmem:[%s0 + $0x10] sm:$0xff]
    %v15 = vld [vmem:[%s0 + $0x18] sm:$0xff]
    %v16 = vld [vmem:[%s0 + $0x20] sm:$0xff]
    %v17 = vld [vmem:[%s0 + $0x28] sm:$0xff]
    %v18 = vld [vmem:[%s0 + $0x30] sm:$0xff]
    %v19 = vld [vmem:[%s0 + $0x38] sm:$0xff]
    %v20 = vld [vmem:[%s0 + $0x40] sm:$0xff]
    %v21 = vld [vmem:[%s0 + $0x48] sm:$0xff]
    %v22 = vld [vmem:[%s0 + $0x50] sm:$0xff]
    %v23 = vld [vmem:[%s0 + $0x58] sm:$0xff]
    %v24 = vld [vmem:[%s0 + $0x60] sm:$0xff]
    %v25 = vld [vmem:[%s0 + $0x68] sm:$0xff]
    %v26 = vld [vmem:[%s0 + $0x70] sm:$0xff]
    %v27 = vld [vmem:[%s0 + $0x78] sm:$0xff]
    %v28 = vld [vmem:[%s1] sm:$0x3]
    %vm29 = vcmask 15360
    %v31 = vsel %vm29, %v12, 0
    %v34 = vsel %vm29, %v13, 0
    %v37 = vsel %vm29, %v14, 0
    %v40 = vsel %vm29, %v15, 0
    %v43 = vsel %vm29, %v16, 0
    %v46 = vsel %vm29, %v17, 0
    %v49 = vsel %vm29, %v18, 0
    %v52 = vsel %vm29, %v19, 0
    %v55 = vsel %vm29, %v20, 0
    %v58 = vsel %vm29, %v21, 0
    %v61 = vsel %vm29, %v22, 0
    %v64 = vsel %vm29, %v23, 0
    %v67 = vsel %vm29, %v24, 0
    %v70 = vsel %vm29, %v25, 0
    %v73 = vsel %vm29, %v26, 0
    %v76 = vsel %vm29, %v27, 0
    %vm78 = vcmask 1041408
    %v80 = vsel %vm78, %v28, 0
    %82 = vmatpush.msra.mxu0 0.0
    %83 = vmatpush.msra.mxu0 0.0
    %84 = vmatpush.msra.mxu0 0.0
    %85 = vmatpush.msra.mxu0 0.0
    %86 = vmatpush.msra.mxu0 0.0
    %87 = vmatpush.msra.mxu0 0.0
    %88 = vmatpush.msra.mxu0 0.0
    %89 = vmatpush.msra.mxu0 0.0
    %90 = vmatpush.msra.mxu0 0.0
    %91 = vmatpush.msra.mxu0 0.0
    %92 = vmatpush.msra.mxu0 0.0
    %93 = vmatpush.msra.mxu0 0.0
    %94 = vmatpush.msra.mxu0 0.0
    %95 = vmatpush.msra.mxu0 0.0
    %96 = vmatpush.msra.mxu0 0.0
    %97 = vmatpush.msra.mxu0 %v80
    %98 = vmatmul.f32.gmra.mxu0 %v31
    %v99 = vpop.f32.mrf.mxu0
    %v100 = vadd.f32 0.0, %v99
    %101 = vmatmul.f32.gmra.mxu0 %v34
    %v102 = vpop.f32.mrf.mxu0
    %v103 = vadd.f32 0.0, %v102
    %104 = vmatmul.f32.gmra.mxu0 %v37
    %v105 = vpop.f32.mrf.mxu0
    %v106 = vadd.f32 0.0, %v105
    %107 = vmatmul.f32.gmra.mxu0 %v40
    %v108 = vpop.f32.mrf.mxu0
    %v109 = vadd.f32 0.0, %v108
    %110 = vmatmul.f32.gmra.mxu0 %v43
    %v111 = vpop.f32.mrf.mxu0
    %v112 = vadd.f32 0.0, %v111
    %113 = vmatmul.f32.gmra.mxu0 %v46
    %v114 = vpop.f32.mrf.mxu0
    %v115 = vadd.f32 0.0, %v114
    %116 = vmatmul.f32.gmra.mxu0 %v49
    %v117 = vpop.f32.mrf.mxu0
    %v118 = vadd.f32 0.0, %v117
    %119 = vmatmul.f32.gmra.mxu0 %v52
    %v120 = vpop.f32.mrf.mxu0
    %v121 = vadd.f32 0.0, %v120
    %122 = vmatmul.f32.gmra.mxu0 %v55
    %v123 = vpop.f32.mrf.mxu0
    %v124 = vadd.f32 0.0, %v123
    %125 = vmatmul.f32.gmra.mxu0 %v58
    %v126 = vpop.f32.mrf.mxu0
    %v127 = vadd.f32 0.0, %v126
    %128 = vmatmul.f32.gmra.mxu0 %v61
    %v129 = vpop.f32.mrf.mxu0
    %v130 = vadd.f32 0.0, %v129
    %131 = vmatmul.f32.gmra.mxu0 %v64
    %v132 = vpop.f32.mrf.mxu0
    %v133 = vadd.f32 0.0, %v132
    %134 = vmatmul.f32.gmra.mxu0 %v67
    %v135 = vpop.f32.mrf.mxu0
    %v136 = vadd.f32 0.0, %v135
    %137 = vmatmul.f32.gmra.mxu0 %v70
    %v138 = vpop.f32.mrf.mxu0
    %v139 = vadd.f32 0.0, %v138
    %140 = vmatmul.f32.gmra.mxu0 %v73
    %v141 = vpop.f32.mrf.mxu0
    %v142 = vadd.f32 0.0, %v141
    %143 = vmatmul.f32.gmra.mxu0 %v76
    %v144 = vpop.f32.mrf.mxu0
    %v145 = vadd.f32 0.0, %v144
    %146 = vdwg.mxu0
    %v147 = vpack.c.bf16 %v100, %v100
    %v148 = vpack.c.bf16 %v103, %v103
    %v149 = vpack.c.bf16 %v106, %v106
    %v150 = vpack.c.bf16 %v109, %v109
    %v151 = vpack.c.bf16 %v112, %v112
    %v152 = vpack.c.bf16 %v115, %v115
    %v153 = vpack.c.bf16 %v118, %v118
    %v154 = vpack.c.bf16 %v121, %v121
    %v155 = vpack.c.bf16 %v124, %v124
    %v156 = vpack.c.bf16 %v127, %v127
    %v157 = vpack.c.bf16 %v130, %v130
    %v158 = vpack.c.bf16 %v133, %v133
    %v159 = vpack.c.bf16 %v136, %v136
    %v160 = vpack.c.bf16 %v139, %v139
    %v161 = vpack.c.bf16 %v142, %v142
    %v162 = vpack.c.bf16 %v145, %v145
    %163 = vst [vmem:[#allocation2] sm:$0xf] %v147
    %164 = vst [vmem:[#allocation2 + $0x4] sm:$0xf] %v148
    %165 = vst [vmem:[#allocation2 + $0x8] sm:$0xf] %v149
    %166 = vst [vmem:[#allocation2 + $0xc] sm:$0xf] %v150
    %167 = vst [vmem:[#allocation2 + $0x10] sm:$0xf] %v151
    %168 = vst [vmem:[#allocation2 + $0x14] sm:$0xf] %v152
    %169 = vst [vmem:[#allocation2 + $0x18] sm:$0xf] %v153
    %170 = vst [vmem:[#allocation2 + $0x1c] sm:$0xf] %v154
    %171 = vst [vmem:[#allocation2 + $0x20] sm:$0xf] %v155
    %172 = vst [vmem:[#allocation2 + $0x24] sm:$0xf] %v156
    %173 = vst [vmem:[#allocation2 + $0x28] sm:$0xf] %v157
    %174 = vst [vmem:[#allocation2 + $0x2c] sm:$0xf] %v158
    %175 = vst [vmem:[#allocation2 + $0x30] sm:$0xf] %v159
    %176 = vst [vmem:[#allocation2 + $0x34] sm:$0xf] %v160
    %177 = vst [vmem:[#allocation2 + $0x38] sm:$0xf] %v161
    %178 = vst [vmem:[#allocation2 + $0x3c] sm:$0xf] %v162
    // Predicated region
    $region10: #{tpu_custom_call.1} parent=1 // pred_check
      _
    $region11: #{tpu_custom_call.1} parent=1 // pred_check_branch
      %180 = sbr.rel (0) target = $region13
    $region12: #{tpu_custom_call.1} parent=1 // pred_region
      %182 = vsyncadd [#allocation3], 0
      %s183 = sshll.u32 [#allocation2], 4
      %s184 = int_to_ptr.vmem [resolvable:$true] %s183
      %s185 = sshll.u32 %s2, 4
      %s186 = int_to_ptr.hbm [resolvable:$true] %s185
      %191 = dma.vmem_to_hbm [thread:$0]  %s184, 1024, %s186, [#allocation3], 64, 64, 4
    $region13: #{tpu_custom_call.1} parent=1 // pred_fallthru
      _
    // Predicated region
    $region14: #{tpu_custom_call.1} parent=1 // pred_check
      _
    $region15: #{tpu_custom_call.1} parent=1 // pred_check_branch
      %193 = sbr.rel (0) target = $region17
    $region16: #{tpu_custom_call.1} parent=1 // pred_region
      %195 = dma.done [#allocation3], 1024
    $region17: #{tpu_custom_call.1} parent=1 // pred_fallthru
      _
    %196 = vsyncpa [#allocation3], 1

</llo_original>
